<compile_context>
chip_gen: v6e
topology: v6e:2x2x1
jax: 0.10.0
libtpu: 0.0.40
codegen_flags: <defaults>
</compile_context>

<pallas_src>
import numpy as np
import jax
import jax.numpy as jnp
from jax.experimental import pallas as pl
from jax.experimental.pallas import tpu as pltpu

# ----- problem sizes -----
B, CIN, H, W = 2, 4, 16, 16      # img: [B, CIN, H, W] PyTorch NCHW
COUT = 8                         # cnn feature dim
STAT_DIM = 6                     # tabular input dim
TAB_HID = 8                      # tab_net feature dim
KH = KW = 3                      # conv kernel (padding=1, "same")
KDIM = KH * KW * CIN             # 36  (im2col K)
M = B * H * W                    # 512 (batch folded into the matmul M dim)
FEAT = COUT + TAB_HID            # 16  (classifier input dim)

# ----- packed-operand slab layout (16, 16) f32, all offsets static -----
#   rows 0..5 , cols 0..7  : w1   (6, 8)
#   row  6    , cols 0..7  : b1   (1, 8)
#   row  7    , cols 0..7  : bc   (1, 8)
#   rows 8..9 , cols 0..5  : stat (B, 6)
#   rows 0..15, col  15    : w2   (16, 1)
#   row  0    , col  14    : b2   (1, 1)
SLAB_R, SLAB_C = 16, 16

# block-diagonal global-average-pool matrix (1/(H*W) folded in), baked as a
# module-scope numpy constant -> a literal under jit, no per-call kron/dispatch.
_POOL_NP = np.kron(np.eye(B, dtype=np.float32),
                   np.full((1, H * W), 1.0 / (H * W), np.float32))   # (B, B*H*W)


# ---------------------------------------------------------------------------
# Fused kernel: conv(im2col matmul) + bias + ReLU + pool(matmul)
#               + tab_net(Linear+ReLU) + concat + classifier matmul + sigmoid.
# Single grid step; all operands live in VMEM.
# ---------------------------------------------------------------------------
def fused_kernel(patches_ref, wc_ref, pool_ref, slab_ref, out_ref):
    # unpack the small-operand slab with static slices (one VMEM tile total)
    slab = slab_ref[...]
    w1   = slab[0:STAT_DIM, 0:TAB_HID]              # (6, 8)
    b1   = slab[STAT_DIM:STAT_DIM + 1, 0:TAB_HID]   # (1, 8)
    bc   = slab[7:8, 0:COUT]                        # (1, 8)
    stat = slab[8:8 + B, 0:STAT_DIM]                # (B, 6)
    w2   = slab[:, 15:16]                           # (16, 1)
    b2   = slab[0:1, 14:15]                         # (1, 1)

    # conv as a single im2col matmul: (B*H*W, 36) @ (36, COUT)
    conv = jnp.dot(patches_ref[...], wc_ref[...],
                   preferred_element_type=jnp.float32)
    conv = jnp.maximum(conv + bc, 0.0)              # conv bias + ReLU

    # per-batch global average pool as a matmul on the (otherwise idle) MXU:
    # pool_ref is (B, B*H*W), block-diagonal with 1/(H*W) entries
    img_feat = jnp.dot(pool_ref[...], conv,
                       preferred_element_type=jnp.float32)   # (B, COUT)

    # tab_net: Linear + ReLU
    tab = jnp.maximum(
        jnp.dot(stat, w1, preferred_element_type=jnp.float32) + b1, 0.0)  # (B, TAB_HID)

    # classifier: lane-concat features then ONE matmul with the full (16,1) weight
    feat = jnp.concatenate([img_feat, tab], axis=1)          # (B, 16)
    logits = jnp.dot(feat, w2, preferred_element_type=jnp.float32) + b2   # (B, 1)

    out_ref[...] = 1.0 / (1.0 + jnp.exp(-logits))            # sigmoid (exp -> EUP)


@jax.jit
def full_model_forward(img_nchw, stat, params):
    # NCHW -> NHWC, then im2col done ONCE here; under jit this fuses into the
    # surrounding XLA program (no per-call op dispatch storm).
    img_nhwc = jnp.transpose(img_nchw, (0, 2, 3, 1))
    img_pad = jnp.pad(img_nhwc, ((0, 0), (1, 1), (1, 1), (0, 0)))
    patches = jnp.stack(
        [img_pad[:, kh:kh + H, kw:kw + W, :]
         for kh in range(KH) for kw in range(KW)],
        axis=3)                                   # (B, H, W, KH*KW, CIN)
    patches = patches.reshape(M, KDIM)            # (512, 36), (kh, kw, cin) ordering

    # conv weight (KH, KW, CIN, COUT) -> (KH*KW*CIN, COUT), same (kh, kw, cin) ordering
    wc_mat = params["wc"].reshape(KDIM, COUT)

    # pack the seven tiny operands into one (16,16) slab (single DMA)
    slab = jnp.zeros((SLAB_R, SLAB_C), jnp.float32)
    slab = slab.at[0:STAT_DIM, 0:TAB_HID].set(params["w1"])
    slab = slab.at[STAT_DIM:STAT_DIM + 1, 0:TAB_HID].set(params["b1"])
    slab = slab.at[7:8, 0:COUT].set(params["bc"])
    slab = slab.at[8:8 + B, 0:STAT_DIM].set(stat)
    slab = slab.at[:, 15:16].set(params["w2"])
    slab = slab.at[0:1, 14:15].set(params["b2"])

    pool = jnp.asarray(_POOL_NP)                  # compile-time constant under jit

    vmem = pl.BlockSpec(memory_space=pltpu.MemorySpace.VMEM)
    return pl.pallas_call(
        fused_kernel,
        out_shape=jax.ShapeDtypeStruct((B, 1), jnp.float32),
        in_specs=[vmem] * 4,
        out_specs=vmem,
    )(patches, wc_mat, pool, slab)


# ---------------------------------------------------------------------------
# Pure-JAX reference for correctness checking.
# ---------------------------------------------------------------------------
def reference_forward(img_nchw, stat, params):
    img_nhwc = jnp.transpose(img_nchw, (0, 2, 3, 1))
    conv = jax.lax.conv_general_dilated(
        img_nhwc, params["wc"], window_strides=(1, 1), padding="SAME",
        dimension_numbers=("NHWC", "HWIO", "NHWC"))
    conv = jnp.maximum(conv + params["bc"].reshape(1, 1, 1, COUT), 0.0)
    img_feat = jnp.mean(conv, axis=(1, 2))
    tab_feat = jnp.maximum(stat @ params["w1"] + params["b1"], 0.0)
    feat = jnp.concatenate([img_feat, tab_feat], axis=1)
    return jax.nn.sigmoid(feat @ params["w2"] + params["b2"])


if __name__ == "__main__":
    key = jax.random.PRNGKey(0)
    ka, kb, k1, k2, k3, k4, k5, k6 = jax.random.split(key, 8)

    params = {
        "wc": jax.random.normal(k1, (KH, KW, CIN, COUT), jnp.float32) * 0.1,
        "bc": jax.random.normal(k2, (1, COUT), jnp.float32) * 0.1,
        "w1": jax.random.normal(k3, (STAT_DIM, TAB_HID), jnp.float32) * 0.1,
        "b1": jax.random.normal(k4, (1, TAB_HID), jnp.float32) * 0.1,
        "w2": jax.random.normal(k5, (COUT + TAB_HID, 1), jnp.float32) * 0.1,
        "b2": jax.random.normal(k6, (1, 1), jnp.float32) * 0.1,
    }

    # deterministic inputs (PyTorch-style NCHW image + tabular stats)
    img = jax.random.normal(ka, (B, CIN, H, W), jnp.float32)
    stat = jax.random.normal(kb, (B, STAT_DIM), jnp.float32)

    out = jax.block_until_ready(full_model_forward(img, stat, params))
    ref = jax.block_until_ready(reference_forward(img, stat, params))

    assert out.shape == (B, 1)
    np.testing.assert_allclose(np.asarray(out), np.asarray(ref), atol=1e-5, rtol=1e-5)
    print("KERNEL_OK")
</pallas_src>

<mosaic_0001>
module attributes {stable_mosaic.version = 11 : i64} {
  func.func @fused_kernel(%arg0: memref<512x36xf32, #tpu.memory_space<vmem>>, %arg1: memref<36x8xf32, #tpu.memory_space<vmem>>, %arg2: memref<2x512xf32, #tpu.memory_space<vmem>>, %arg3: memref<16x16xf32, #tpu.memory_space<vmem>>, %arg4: memref<2x1xf32, #tpu.memory_space<vmem>>) attributes {dimension_semantics = [], scalar_prefetch = 0 : i64, scratch_operands = 0 : i64, tpu.core_type = #tpu.core_type<tc>} {
    %c0 = arith.constant 0 : index
    %c0_0 = arith.constant 0 : index
    %0 = vector.load %arg3[%c0, %c0_0] : memref<16x16xf32, #tpu.memory_space<vmem>>, vector<16x16xf32>
    %1 = vector.extract_strided_slice %0 {offsets = [0, 0], sizes = [6, 8], strides = [1, 1]} : vector<16x16xf32> to vector<6x8xf32>
    %2 = vector.extract_strided_slice %0 {offsets = [6, 0], sizes = [1, 8], strides = [1, 1]} : vector<16x16xf32> to vector<1x8xf32>
    %3 = vector.extract_strided_slice %0 {offsets = [7, 0], sizes = [1, 8], strides = [1, 1]} : vector<16x16xf32> to vector<1x8xf32>
    %4 = vector.extract_strided_slice %0 {offsets = [8, 0], sizes = [2, 6], strides = [1, 1]} : vector<16x16xf32> to vector<2x6xf32>
    %5 = vector.extract_strided_slice %0 {offsets = [0, 15], sizes = [16, 1], strides = [1, 1]} : vector<16x16xf32> to vector<16x1xf32>
    %6 = vector.extract_strided_slice %0 {offsets = [0, 14], sizes = [1, 1], strides = [1, 1]} : vector<16x16xf32> to vector<1x1xf32>
    %c0_1 = arith.constant 0 : index
    %c0_2 = arith.constant 0 : index
    %7 = vector.load %arg0[%c0_1, %c0_2] : memref<512x36xf32, #tpu.memory_space<vmem>>, vector<512x36xf32>
    %c0_3 = arith.constant 0 : index
    %c0_4 = arith.constant 0 : index
    %8 = vector.load %arg1[%c0_3, %c0_4] : memref<36x8xf32, #tpu.memory_space<vmem>>, vector<36x8xf32>
    %cst = arith.constant dense<0.000000e+00> : vector<512x8xf32>
    %9 = tpu.matmul %7, %8, %cst {dimension_numbers = #tpu.dot_dimension_numbers<[1], [0], [0], [1], [0, 0, 1, 1], [], []>} : vector<512x36xf32>, vector<36x8xf32>, vector<512x8xf32> -> vector<512x8xf32>
    %10 = vector.broadcast %3 : vector<1x8xf32> to vector<512x8xf32>
    %11 = arith.addf %9, %10 : vector<512x8xf32>
    %cst_5 = arith.constant 0.000000e+00 : f32
    %12 = vector.broadcast %cst_5 : f32 to vector<512x8xf32>
    %13 = arith.maximumf %11, %12 : vector<512x8xf32>
    %c0_6 = arith.constant 0 : index
    %c0_7 = arith.constant 0 : index
    %14 = vector.load %arg2[%c0_6, %c0_7] : memref<2x512xf32, #tpu.memory_space<vmem>>, vector<2x512xf32>
    %cst_8 = arith.constant dense<0.000000e+00> : vector<2x8xf32>
    %15 = tpu.matmul %14, %13, %cst_8 {dimension_numbers = #tpu.dot_dimension_numbers<[1], [0], [0], [1], [0, 0, 1, 1], [], []>} : vector<2x512xf32>, vector<512x8xf32>, vector<2x8xf32> -> vector<2x8xf32>
    %cst_9 = arith.constant dense<0.000000e+00> : vector<2x8xf32>
    %16 = tpu.matmul %4, %1, %cst_9 {dimension_numbers = #tpu.dot_dimension_numbers<[1], [0], [0], [1], [0, 0, 1, 1], [], []>} : vector<2x6xf32>, vector<6x8xf32>, vector<2x8xf32> -> vector<2x8xf32>
    %17 = vector.broadcast %2 : vector<1x8xf32> to vector<2x8xf32>
    %18 = arith.addf %16, %17 : vector<2x8xf32>
    %cst_10 = arith.constant 0.000000e+00 : f32
    %19 = vector.broadcast %cst_10 : f32 to vector<2x8xf32>
    %20 = arith.maximumf %18, %19 : vector<2x8xf32>
    %21 = tpu.concatenate %15, %20 in 1 : vector<2x8xf32>, vector<2x8xf32> -> vector<2x16xf32>
    %cst_11 = arith.constant dense<0.000000e+00> : vector<2x1xf32>
    %22 = tpu.matmul %21, %5, %cst_11 {dimension_numbers = #tpu.dot_dimension_numbers<[1], [0], [0], [1], [0, 0, 1, 1], [], []>} : vector<2x16xf32>, vector<16x1xf32>, vector<2x1xf32> -> vector<2x1xf32>
    %23 = vector.broadcast %6 : vector<1x1xf32> to vector<2x1xf32>
    %24 = arith.addf %22, %23 : vector<2x1xf32>
    %cst_12 = arith.constant 0.000000e+00 : f32
    %25 = vector.broadcast %cst_12 : f32 to vector<2x1xf32>
    %26 = arith.subf %25, %24 : vector<2x1xf32>
    %27 = math.exp %26 : vector<2x1xf32>
    %cst_13 = arith.constant 1.000000e+00 : f32
    %28 = vector.broadcast %cst_13 : f32 to vector<2x1xf32>
    %29 = arith.addf %28, %27 : vector<2x1xf32>
    %cst_14 = arith.constant 1.000000e+00 : f32
    %30 = vector.broadcast %cst_14 : f32 to vector<2x1xf32>
    %31 = arith.divf %30, %29 : vector<2x1xf32>
    %c0_15 = arith.constant 0 : index
    %c0_16 = arith.constant 0 : index
    %32 = vector.load %arg4[%c0_15, %c0_16] : memref<2x1xf32, #tpu.memory_space<vmem>>, vector<2x1xf32>
    tpu.vector_store %arg4[%c0_15, %c0_16], %31 {strides = array<i32>} : memref<2x1xf32, #tpu.memory_space<vmem>>, vector<2x1xf32>,
    return
  }
}

</mosaic_0001>

<llo_original>
// kernel: full_model_forward.1
$region0: #{full_model_forward.1}
  #allocation0 [shape = 'u32[]', space=smem, size = 0x4, offset = 0x4, fixed_abs, tag = 'smem constant byte address 0x4 - core index']
  #allocation1 [shape = 'u32[144,128]{1,0:T(1,128)}', space=vmem, size = 0x12000, scoped, tag = 'internal scratch']
  %s0 = inlined_call_operand.vmem [shape: f32[512,36], index: 0, kind: input, shape index: {}]
  %s1 = inlined_call_operand.vmem [shape: f32[36,8], index: 1, kind: input, shape index: {}]
  %s2 = inlined_call_operand.vmem [shape: f32[2,512], index: 2, kind: input, shape index: {}]
  %s3 = inlined_call_operand.vmem [shape: f32[16,16], index: 3, kind: input, shape index: {}]
  %s4 = inlined_call_operand.vmem [shape: f32[2,1], index: 4, kind: output, shape index: {}]
  %s5 = sld [smem:[#allocation0]]
  $region26: #{full_model_forward.1} parent=0
    _
  %s7 = ssub.s32 1, %s5
  %s8 = scalar_select 0, %s7, %s5
  // Predicated region
  $region2: #{full_model_forward.1} parent=0 // pred_check
    _
  $region3: #{full_model_forward.1} parent=0 // pred_check_branch
    %10 = sbr.rel (0) target = $region5
  $region4: #{full_model_forward.1} parent=0 // pred_region
    _
  $region5: #{full_model_forward.1} parent=0 // pred_fallthru
    _
  // Predicated region
  $region6: #{full_model_forward.1} parent=0 // pred_check
    _
  $region7: #{full_model_forward.1} parent=0 // pred_check_branch
    %12 = sbr.rel (0) target = $region9
  $region8: #{full_model_forward.1} parent=0 // pred_region
    _
  $region9: #{full_model_forward.1} parent=0 // pred_fallthru
    _
  // Predicated region
  $region10: #{full_model_forward.1} parent=0 // pred_check
    _
  $region11: #{full_model_forward.1} parent=0 // pred_check_branch
    %14 = sbr.rel (0) target = $region13
  $region12: #{full_model_forward.1} parent=0 // pred_region
    _
  $region13: #{full_model_forward.1} parent=0 // pred_fallthru
    _
  // Predicated region
  $region14: #{full_model_forward.1} parent=0 // pred_check
    _
  $region15: #{full_model_forward.1} parent=0 // pred_check_branch
    %16 = sbr.rel (0) target = $region17
  $region16: #{full_model_forward.1} parent=0 // pred_region
    _
  $region17: #{full_model_forward.1} parent=0 // pred_fallthru
    _
  %v17 = vld [vmem:[%s3] sm:$0xff]
  %v18 = vld [vmem:[%s3 + $0x8] sm:$0xff]
  %v19 = vld [vmem:[%s0] sm:$0xff]
  %v20 = vld [vmem:[%s0 + $0x8] sm:$0xff]
  %v21 = vld [vmem:[%s0 + $0x10] sm:$0xff]
  %v22 = vld [vmem:[%s0 + $0x18] sm:$0xff]
  %v23 = vld [vmem:[%s0 + $0x20] sm:$0xff]
  %v24 = vld [vmem:[%s0 + $0x28] sm:$0xff]
  %v25 = vld [vmem:[%s0 + $0x30] sm:$0xff]
  %v26 = vld [vmem:[%s0 + $0x38] sm:$0xff]
  %v27 = vld [vmem:[%s0 + $0x40] sm:$0xff]
  %v28 = vld [vmem:[%s0 + $0x48] sm:$0xff]
  %v29 = vld [vmem:[%s0 + $0x50] sm:$0xff]
  %v30 = vld [vmem:[%s0 + $0x58] sm:$0xff]
  %v31 = vld [vmem:[%s0 + $0x60] sm:$0xff]
  %v32 = vld [vmem:[%s0 + $0x68] sm:$0xff]
  %v33 = vld [vmem:[%s0 + $0x70] sm:$0xff]
  %v34 = vld [vmem:[%s0 + $0x78] sm:$0xff]
  %v35 = vld [vmem:[%s0 + $0x80] sm:$0xff]
  %v36 = vld [vmem:[%s0 + $0x88] sm:$0xff]
  %v37 = vld [vmem:[%s0 + $0x90] sm:$0xff]
  %v38 = vld [vmem:[%s0 + $0x98] sm:$0xff]
  %v39 = vld [vmem:[%s0 + $0xa0] sm:$0xff]
  %v40 = vld [vmem:[%s0 + $0xa8] sm:$0xff]
  %v41 = vld [vmem:[%s0 + $0xb0] sm:$0xff]
  %v42 = vld [vmem:[%s0 + $0xb8] sm:$0xff]
  %v43 = vld [vmem:[%s0 + $0xc0] sm:$0xff]
  %v44 = vld [vmem:[%s0 + $0xc8] sm:$0xff]
  %v45 = vld [vmem:[%s0 + $0xd0] sm:$0xff]
  %v46 = vld [vmem:[%s0 + $0xd8] sm:$0xff]
  %v47 = vld [vmem:[%s0 + $0xe0] sm:$0xff]
  %v48 = vld [vmem:[%s0 + $0xe8] sm:$0xff]
  %v49 = vld [vmem:[%s0 + $0xf0] sm:$0xff]
  %v50 = vld [vmem:[%s0 + $0xf8] sm:$0xff]
  %v51 = vld [vmem:[%s0 + $0x100] sm:$0xff]
  %v52 = vld [vmem:[%s0 + $0x108] sm:$0xff]
  %v53 = vld [vmem:[%s0 + $0x110] sm:$0xff]
  %v54 = vld [vmem:[%s0 + $0x118] sm:$0xff]
  %v55 = vld [vmem:[%s0 + $0x120] sm:$0xff]
  %v56 = vld [vmem:[%s0 + $0x128] sm:$0xff]
  %v57 = vld [vmem:[%s0 + $0x130] sm:$0xff]
  %v58 = vld [vmem:[%s0 + $0x138] sm:$0xff]
  %v59 = vld [vmem:[%s0 + $0x140] sm:$0xff]
  %v60 = vld [vmem:[%s0 + $0x148] sm:$0xff]
  %v61 = vld [vmem:[%s0 + $0x150] sm:$0xff]
  %v62 = vld [vmem:[%s0 + $0x158] sm:$0xff]
  %v63 = vld [vmem:[%s0 + $0x160] sm:$0xff]
  %v64 = vld [vmem:[%s0 + $0x168] sm:$0xff]
  %v65 = vld [vmem:[%s0 + $0x170] sm:$0xff]
  %v66 = vld [vmem:[%s0 + $0x178] sm:$0xff]
  %v67 = vld [vmem:[%s0 + $0x180] sm:$0xff]
  %v68 = vld [vmem:[%s0 + $0x188] sm:$0xff]
  %v69 = vld [vmem:[%s0 + $0x190] sm:$0xff]
  %v70 = vld [vmem:[%s0 + $0x198] sm:$0xff]
  %v71 = vld [vmem:[%s0 + $0x1a0] sm:$0xff]
  %v72 = vld [vmem:[%s0 + $0x1a8] sm:$0xff]
  %v73 = vld [vmem:[%s0 + $0x1b0] sm:$0xff]
  %v74 = vld [vmem:[%s0 + $0x1b8] sm:$0xff]
  %v75 = vld [vmem:[%s0 + $0x1c0] sm:$0xff]
  %v76 = vld [vmem:[%s0 + $0x1c8] sm:$0xff]
  %v77 = vld [vmem:[%s0 + $0x1d0] sm:$0xff]
  %v78 = vld [vmem:[%s0 + $0x1d8] sm:$0xff]
  %v79 = vld [vmem:[%s0 + $0x1e0] sm:$0xff]
  %v80 = vld [vmem:[%s0 + $0x1e8] sm:$0xff]
  %v81 = vld [vmem:[%s0 + $0x1f0] sm:$0xff]
  %v82 = vld [vmem:[%s0 + $0x1f8] sm:$0xff]
  %v83 = vld [vmem:[%s1] sm:$0xff]
  %v84 = vld [vmem:[%s1 + $0x8] sm:$0xff]
  %v85 = vld [vmem:[%s1 + $0x10] sm:$0xff]
  %v86 = vld [vmem:[%s1 + $0x18] sm:$0xff]
  %v87 = vld [vmem:[%s1 + $0x20] sm:$0xf]
  %v88 = vlaneseq
  %v89 = vshrl.u32 %v88, 7
  %v90 = vsub.s32 7, %v89
  %v91 = vrot.slane %v17, %v90
  %vm92 = vcmask 293888
  %v94 = vsel %vm92, %v19, 0
  %v97 = vsel %vm92, %v20, 0
  %v100 = vsel %vm92, %v21, 0
  %v103 = vsel %vm92, %v22, 0
  %v106 = vsel %vm92, %v23, 0
  %v109 = vsel %vm92, %v24, 0
  %v112 = vsel %vm92, %v25, 0
  %v115 = vsel %vm92, %v26, 0
  %v118 = vsel %vm92, %v27, 0
  %v121 = vsel %vm92, %v28, 0
  %v124 = vsel %vm92, %v29, 0
  %v127 = vsel %vm92, %v30, 0
  %v130 = vsel %vm92, %v31, 0
  %v133 = vsel %vm92, %v32, 0
  %v136 = vsel %vm92, %v33, 0
  %v139 = vsel %vm92, %v34, 0
  %v142 = vsel %vm92, %v35, 0
  %v145 = vsel %vm92, %v36, 0
  %v148 = vsel %vm92, %v37, 0
  %v151 = vsel %vm92, %v38, 0
  %v154 = vsel %vm92, %v39, 0
  %v157 = vsel %vm92, %v40, 0
  %v160 = vsel %vm92, %v41, 0
  %v163 = vsel %vm92, %v42, 0
  %v166 = vsel %vm92, %v43, 0
  %v169 = vsel %vm92, %v44, 0
  %v172 = vsel %vm92, %v45, 0
  %v175 = vsel %vm92, %v46, 0
  %v178 = vsel %vm92, %v47, 0
  %v181 = vsel %vm92, %v48, 0
  %v184 = vsel %vm92, %v49, 0
  %v187 = vsel %vm92, %v50, 0
  %v190 = vsel %vm92, %v51, 0
  %v193 = vsel %vm92, %v52, 0
  %v196 = vsel %vm92, %v53, 0
  %v199 = vsel %vm92, %v54, 0
  %v202 = vsel %vm92, %v55, 0
  %v205 = vsel %vm92, %v56, 0
  %v208 = vsel %vm92, %v57, 0
  %v211 = vsel %vm92, %v58, 0
  %v214 = vsel %vm92, %v59, 0
  %v217 = vsel %vm92, %v60, 0
  %v220 = vsel %vm92, %v61, 0
  %v223 = vsel %vm92, %v62, 0
  %v226 = vsel %vm92, %v63, 0
  %v229 = vsel %vm92, %v64, 0
  %v232 = vsel %vm92, %v65, 0
  %v235 = vsel %vm92, %v66, 0
  %v238 = vsel %vm92, %v67, 0
  %v241 = vsel %vm92, %v68, 0
  %v244 = vsel %vm92, %v69, 0
  %v247 = vsel %vm92, %v70, 0
  %v250 = vsel %vm92, %v71, 0
  %v253 = vsel %vm92, %v72, 0
  %v256 = vsel %vm92, %v73, 0
  %v259 = vsel %vm92, %v74, 0
  %v262 = vsel %vm92, %v75, 0
  %v265 = vsel %vm92, %v76, 0
  %v268 = vsel %vm92, %v77, 0
  %v271 = vsel %vm92, %v78, 0
  %v274 = vsel %vm92, %v79, 0
  %v277 = vsel %vm92, %v80, 0
  %v280 = vsel %vm92, %v81, 0
  %v283 = vsel %vm92, %v82, 0
  %vm285 = vcmask 1043456
  %v287 = vsel %vm285, %v87, 0
  %289 = vmatprep.subr.mxu0 0.0
  %290 = vmatpush1.msra.mxu0 0.0
  %291 = vmatprep.subr.mxu0 0.0
  %292 = vmatpush1.msra.mxu0 0.0
  %293 = vmatprep.subr.mxu0 0.0
  %294 = vmatpush1.msra.mxu0 0.0
  %295 = vmatprep.subr.mxu0 0.0
  %296 = vmatpush1.msra.mxu0 0.0
  %297 = vmatprep.subr.mxu0 0.0
  %298 = vmatpush1.msra.mxu0 0.0
  %299 = vmatprep.subr.mxu0 0.0
  %300 = vmatpush1.msra.mxu0 0.0
  %301 = vmatprep.subr.mxu0 0.0
  %302 = vmatpush1.msra.mxu0 0.0
  %303 = vmatprep.subr.mxu0 0.0
  %304 = vmatpush1.msra.mxu0 0.0
  %305 = vmatprep.subr.mxu0 0.0
  %306 = vmatpush1.msra.mxu0 0.0
  %307 = vmatprep.subr.mxu0 0.0
  %308 = vmatpush1.msra.mxu0 0.0
  %309 = vmatprep.subr.mxu0 0.0
  %310 = vmatpush1.msra.mxu0 0.0
  %311 = vmatprep.subr.mxu0 0.0
  %312 = vmatpush1.msra.mxu0 %v287
  %313 = vmatprep.subr.mxu0 0.0
  %314 = vmatpush1.msra.mxu0 %v86
  %315 = vmatprep.subr.mxu0 0.0
  %316 = vmatpush1.msra.mxu0 %v85
  %317 = vmatprep.subr.mxu0 0.0
  %318 = vmatpush1.msra.mxu0 %v84
  %319 = vmatprep.subr.mxu0 0.0
  %320 = vmatpush1.msra.mxu0 %v83
  %321 = vmatprep.subr.mxu0 0.0
  %322 = vmatpush2.msra.mxu0 0.0
  %323 = vmatprep.subr.mxu0 0.0
  %324 = vmatpush2.msra.mxu0 0.0
  %325 = vmatprep.subr.mxu0 0.0
  %326 = vmatpush2.msra.mxu0 0.0
  %327 = vmatprep.subr.mxu0 0.0
  %328 = vmatpush2.msra.mxu0 0.0
  %329 = vmatprep.subr.mxu0 0.0
  %330 = vmatpush2.msra.mxu0 0.0
  %331 = vmatprep.subr.mxu0 0.0
  %332 = vmatpush2.msra.mxu0 0.0
  %333 = vmatprep.subr.mxu0 0.0
  %334 = vmatpush2.msra.mxu0 0.0
  %335 = vmatprep.subr.mxu0 0.0
  %336 = vmatpush2.msra.mxu0 0.0
  %337 = vmatprep.subr.mxu0 0.0
  %338 = vmatpush2.msra.mxu0 0.0
  %339 = vmatprep.subr.mxu0 0.0
  %340 = vmatpush2.msra.mxu0 0.0
  %341 = vmatprep.subr.mxu0 0.0
  %342 = vmatpush2.msra.mxu0 0.0
  %343 = vmatprep.subr.mxu0 0.0
  %344 = vmatpush2.msra.mxu0 0.0
  %345 = vmatprep.subr.mxu0 0.0
  %346 = vmatpush2.msra.mxu0 0.0
  %347 = vmatprep.subr.mxu0 0.0
  %348 = vmatpush2.msra.mxu0 0.0
  %349 = vmatprep.subr.mxu0 0.0
  %350 = vmatpush2.msra.mxu0 0.0
  %351 = vmatprep.subr.mxu0 0.0
  %352 = vmatpush2.msra.mxu0 0.0
  %353 = vmatprep.mubr.f32.mxu0 0.0
  %354 = vmatmul.mubr.f32.gmra.mxu0 %v94
  %v355 = vpop.f32.mrf.mxu0
  %v356 = vadd.f32 %v91, %v355
  %v357 = vpop.f32.mrf.mxu0
  %358 = vmatprep.mubr.f32.mxu0 0.0
  %359 = vmatmul.mubr.f32.gmra.mxu0 %v97
  %v360 = vpop.f32.mrf.mxu0
  %v361 = vadd.f32 %v91, %v360
  %v362 = vpop.f32.mrf.mxu0
  %363 = vmatprep.mubr.f32.mxu0 0.0
  %364 = vmatmul.mubr.f32.gmra.mxu0 %v100
  %v365 = vpop.f32.mrf.mxu0
  %v366 = vadd.f32 %v91, %v365
  %v367 = vpop.f32.mrf.mxu0
  %368 = vmatprep.mubr.f32.mxu0 0.0
  %369 = vmatmul.mubr.f32.gmra.mxu0 %v103
  %v370 = vpop.f32.mrf.mxu0
  %v371 = vadd.f32 %v91, %v370
  %v372 = vpop.f32.mrf.mxu0
  %373 = vmatprep.mubr.f32.mxu0 0.0
  %374 = vmatmul.mubr.f32.gmra.mxu0 %v106
  %v375 = vpop.f32.mrf.mxu0
  %v376 = vadd.f32 %v91, %v375
  %v377 = vpop.f32.mrf.mxu0
  %378 = vmatprep.mubr.f32.mxu0 0.0
  %379 = vmatmul.mubr.f32.gmra.mxu0 %v109
  %v380 = vpop.f32.mrf.mxu0
  %v381 = vadd.f32 %v91, %v380
  %v382 = vpop.f32.mrf.mxu0
  %383 = vmatprep.mubr.f32.mxu0 0.0
  %384 = vmatmul.mubr.f32.gmra.mxu0 %v112
  %v385 = vpop.f32.mrf.mxu0
  %v386 = vadd.f32 %v91, %v385
  %v387 = vpop.f32.mrf.mxu0
  %388 = vmatprep.mubr.f32.mxu0 0.0
  %389 = vmatmul.mubr.f32.gmra.mxu0 %v115
  %v390 = vpop.f32.mrf.mxu0
  %v391 = vadd.f32 %v91, %v390
  %v392 = vpop.f32.mrf.mxu0
  %393 = vmatprep.mubr.f32.mxu0 0.0
  %394 = vmatmul.mubr.f32.gmra.mxu0 %v118
  %v395 = vpop.f32.mrf.mxu0
  %v396 = vadd.f32 %v91, %v395
  %v397 = vpop.f32.mrf.mxu0
  %398 = vmatprep.mubr.f32.mxu0 0.0
  %399 = vmatmul.mubr.f32.gmra.mxu0 %v121
  %v400 = vpop.f32.mrf.mxu0
  %v401 = vadd.f32 %v91, %v400
  %v402 = vpop.f32.mrf.mxu0
  %403 = vmatprep.mubr.f32.mxu0 0.0
  %404 = vmatmul.mubr.f32.gmra.mxu0 %v124
  %v405 = vpop.f32.mrf.mxu0
  %v406 = vadd.f32 %v91, %v405
  %v407 = vpop.f32.mrf.mxu0
  %408 = vmatprep.mubr.f32.mxu0 0.0
  %409 = vmatmul.mubr.f32.gmra.mxu0 %v127
  %v410 = vpop.f32.mrf.mxu0
  %v411 = vadd.f32 %v91, %v410
  %v412 = vpop.f32.mrf.mxu0
  %413 = vmatprep.mubr.f32.mxu0 0.0
  %414 = vmatmul.mubr.f32.gmra.mxu0 %v130
  %v415 = vpop.f32.mrf.mxu0
  %v416 = vadd.f32 %v91, %v415
  %v417 = vpop.f32.mrf.mxu0
  %418 = vmatprep.mubr.f32.mxu0 0.0
  %419 = vmatmul.mubr.f32.gmra.mxu0 %v133
  %v420 = vpop.f32.mrf.mxu0
  %v421 = vadd.f32 %v91, %v420
  %v422 = vpop.f32.mrf.mxu0
  %423 = vmatprep.mubr.f32.mxu0 0.0
  %424 = vmatmul.mubr.f32.gmra.mxu0 %v136
  %v425 = vpop.f32.mrf.mxu0
  %v426 = vadd.f32 %v91, %v425
  %v427 = vpop.f32.mrf.mxu0
  %428 = vmatprep.mubr.f32.mxu0 0.0
  %429 = vmatmul.mubr.f32.gmra.mxu0 %v139
  %v430 = vpop.f32.mrf.mxu0
  %v431 = vadd.f32 %v91, %v430
  %v432 = vpop.f32.mrf.mxu0
  %433 = vmatprep.mubr.f32.mxu0 0.0
  %434 = vmatmul.mubr.f32.gmra.mxu0 %v142
  %v435 = vpop.f32.mrf.mxu0
  %v436 = vadd.f32 %v91, %v435
  %v437 = vpop.f32.mrf.mxu0
  %438 = vmatprep.mubr.f32.mxu0 0.0
  %439 = vmatmul.mubr.f32.gmra.mxu0 %v145
  %v440 = vpop.f32.mrf.mxu0
  %v441 = vadd.f32 %v91, %v440
  %v442 = vpop.f32.mrf.mxu0
  %443 = vmatprep.mubr.f32.mxu0 0.0
  %444 = vmatmul.mubr.f32.gmra.mxu0 %v148
  %v445 = vpop.f32.mrf.mxu0
  %v446 = vadd.f32 %v91, %v445
  %v447 = vpop.f32.mrf.mxu0
  %448 = vmatprep.mubr.f32.mxu0 0.0
  %449 = vmatmul.mubr.f32.gmra.mxu0 %v151
  %v450 = vpop.f32.mrf.mxu0
  %v451 = vadd.f32 %v91, %v450
  %v452 = vpop.f32.mrf.mxu0
  %453 = vmatprep.mubr.f32.mxu0 0.0
  %454 = vmatmul.mubr.f32.gmra.mxu0 %v154
  %v455 = vpop.f32.mrf.mxu0
  %v456 = vadd.f32 %v91, %v455
  %v457 = vpop.f32.mrf.mxu0
  %458 = vmatprep.mubr.f32.mxu0 0.0
  %459 = vmatmul.mubr.f32.gmra.mxu0 %v157
  %v460 = vpop.f32.mrf.mxu0
  %v461 = vadd.f32 %v91, %v460
  %v462 = vpop.f32.mrf.mxu0
  %463 = vmatprep.mubr.f32.mxu0 0.0
  %464 = vmatmul.mubr.f32.gmra.mxu0 %v160
  %v465 = vpop.f32.mrf.mxu0
  %v466 = vadd.f32 %v91, %v465
  %v467 = vpop.f32.mrf.mxu0
  %468 = vmatprep.mubr.f32.mxu0 0.0
  %469 = vmatmul.mubr.f32.gmra.mxu0 %v163
  %v470 = vpop.f32.mrf.mxu0
  %v471 = vadd.f32 %v91, %v470
  %v472 = vpop.f32.mrf.mxu0
  %473 = vmatprep.mubr.f32.mxu0 0.0
  %474 = vmatmul.mubr.f32.gmra.mxu0 %v166
  %v475 = vpop.f32.mrf.mxu0
  %v476 = vadd.f32 %v91, %v475
  %v477 = vpop.f32.mrf.mxu0
  %478 = vmatprep.mubr.f32.mxu0 0.0
  %479 = vmatmul.mubr.f32.gmra.mxu0 %v169
  %v480 = vpop.f32.mrf.mxu0
  %v481 = vadd.f32 %v91, %v480
  %v482 = vpop.f32.mrf.mxu0
  %483 = vmatprep.mubr.f32.mxu0 0.0
  %484 = vmatmul.mubr.f32.gmra.mxu0 %v172
  %v485 = vpop.f32.mrf.mxu0
  %v486 = vadd.f32 %v91, %v485
  %v487 = vpop.f32.mrf.mxu0
  %488 = vmatprep.mubr.f32.mxu0 0.0
  %489 = vmatmul.mubr.f32.gmra.mxu0 %v175
  %v490 = vpop.f32.mrf.mxu0
  %v491 = vadd.f32 %v91, %v490
  %v492 = vpop.f32.mrf.mxu0
  %493 = vmatprep.mubr.f32.mxu0 0.0
  %494 = vmatmul.mubr.f32.gmra.mxu0 %v178
  %v495 = vpop.f32.mrf.mxu0
  %v496 = vadd.f32 %v91, %v495
  %v497 = vpop.f32.mrf.mxu0
  %498 = vmatprep.mubr.f32.mxu0 0.0
  %499 = vmatmul.mubr.f32.gmra.mxu0 %v181
  %v500 = vpop.f32.mrf.mxu0
  %v501 = vadd.f32 %v91, %v500
  %v502 = vpop.f32.mrf.mxu0
  %503 = vmatprep.mubr.f32.mxu0 0.0
  %504 = vmatmul.mubr.f32.gmra.mxu0 %v184
  %v505 = vpop.f32.mrf.mxu0
  %v506 = vadd.f32 %v91, %v505
  %v507 = vpop.f32.mrf.mxu0
  %508 = vmatprep.mubr.f32.mxu0 0.0
  %509 = vmatmul.mubr.f32.gmra.mxu0 %v187
  %v510 = vpop.f32.mrf.mxu0
  %v511 = vadd.f32 %v91, %v510
  %v512 = vpop.f32.mrf.mxu0
  %513 = vmatprep.mubr.f32.mxu0 0.0
  %514 = vmatmul.mubr.f32.gmra.mxu0 %v190
  %v515 = vpop.f32.mrf.mxu0
  %v516 = vadd.f32 %v91, %v515
  %v517 = vpop.f32.mrf.mxu0
  %518 = vmatprep.mubr.f32.mxu0 0.0
  %519 = vmatmul.mubr.f32.gmra.mxu0 %v193
  %v520 = vpop.f32.mrf.mxu0
  %v521 = vadd.f32 %v91, %v520
  %v522 = vpop.f32.mrf.mxu0
  %523 = vmatprep.mubr.f32.mxu0 0.0
  %524 = vmatmul.mubr.f32.gmra.mxu0 %v196
  %v525 = vpop.f32.mrf.mxu0
  %v526 = vadd.f32 %v91, %v525
  %v527 = vpop.f32.mrf.mxu0
  %528 = vmatprep.mubr.f32.mxu0 0.0
  %529 = vmatmul.mubr.f32.gmra.mxu0 %v199
  %v530 = vpop.f32.mrf.mxu0
  %v531 = vadd.f32 %v91, %v530
  %v532 = vpop.f32.mrf.mxu0
  %533 = vmatprep.mubr.f32.mxu0 0.0
  %534 = vmatmul.mubr.f32.gmra.mxu0 %v202
  %v535 = vpop.f32.mrf.mxu0
  %v536 = vadd.f32 %v91, %v535
  %v537 = vpop.f32.mrf.mxu0
  %538 = vmatprep.mubr.f32.mxu0 0.0
  %539 = vmatmul.mubr.f32.gmra.mxu0 %v205
  %v540 = vpop.f32.mrf.mxu0
  %v541 = vadd.f32 %v91, %v540
  %v542 = vpop.f32.mrf.mxu0
  %543 = vmatprep.mubr.f32.mxu0 0.0
  %544 = vmatmul.mubr.f32.gmra.mxu0 %v208
  %v545 = vpop.f32.mrf.mxu0
  %v546 = vadd.f32 %v91, %v545
  %v547 = vpop.f32.mrf.mxu0
  %548 = vmatprep.mubr.f32.mxu0 0.0
  %549 = vmatmul.mubr.f32.gmra.mxu0 %v211
  %v550 = vpop.f32.mrf.mxu0
  %v551 = vadd.f32 %v91, %v550
  %v552 = vpop.f32.mrf.mxu0
  %553 = vmatprep.mubr.f32.mxu0 0.0
  %554 = vmatmul.mubr.f32.gmra.mxu0 %v214
  %v555 = vpop.f32.mrf.mxu0
  %v556 = vadd.f32 %v91, %v555
  %v557 = vpop.f32.mrf.mxu0
  %558 = vmatprep.mubr.f32.mxu0 0.0
  %559 = vmatmul.mubr.f32.gmra.mxu0 %v217
  %v560 = vpop.f32.mrf.mxu0
  %v561 = vadd.f32 %v91, %v560
  %v562 = vpop.f32.mrf.mxu0
  %563 = vmatprep.mubr.f32.mxu0 0.0
  %564 = vmatmul.mubr.f32.gmra.mxu0 %v220
  %v565 = vpop.f32.mrf.mxu0
  %v566 = vadd.f32 %v91, %v565
  %v567 = vpop.f32.mrf.mxu0
  %568 = vmatprep.mubr.f32.mxu0 0.0
  %569 = vmatmul.mubr.f32.gmra.mxu0 %v223
  %v570 = vpop.f32.mrf.mxu0
  %v571 = vadd.f32 %v91, %v570
  %v572 = vpop.f32.mrf.mxu0
  %573 = vmatprep.mubr.f32.mxu0 0.0
  %574 = vmatmul.mubr.f32.gmra.mxu0 %v226
  %v575 = vpop.f32.mrf.mxu0
  %v576 = vadd.f32 %v91, %v575
  %v577 = vpop.f32.mrf.mxu0
  %578 = vmatprep.mubr.f32.mxu0 0.0
  %579 = vmatmul.mubr.f32.gmra.mxu0 %v229
  %v580 = vpop.f32.mrf.mxu0
  %v581 = vadd.f32 %v91, %v580
  %v582 = vpop.f32.mrf.mxu0
  %583 = vmatprep.mubr.f32.mxu0 0.0
  %584 = vmatmul.mubr.f32.gmra.mxu0 %v232
  %v585 = vpop.f32.mrf.mxu0
  %v586 = vadd.f32 %v91, %v585
  %v587 = vpop.f32.mrf.mxu0
  %588 = vmatprep.mubr.f32.mxu0 0.0
  %589 = vmatmul.mubr.f32.gmra.mxu0 %v235
  %v590 = vpop.f32.mrf.mxu0
  %v591 = vadd.f32 %v91, %v590
  %v592 = vpop.f32.mrf.mxu0
  %593 = vmatprep.mubr.f32.mxu0 0.0
  %594 = vmatmul.mubr.f32.gmra.mxu0 %v238
  %v595 = vpop.f32.mrf.mxu0
  %v596 = vadd.f32 %v91, %v595
  %v597 = vpop.f32.mrf.mxu0
  %598 = vmatprep.mubr.f32.mxu0 0.0
  %599 = vmatmul.mubr.f32.gmra.mxu0 %v241
  %v600 = vpop.f32.mrf.mxu0
  %v601 = vadd.f32 %v91, %v600
  %v602 = vpop.f32.mrf.mxu0
  %603 = vmatprep.mubr.f32.mxu0 0.0
  %604 = vmatmul.mubr.f32.gmra.mxu0 %v244
  %v605 = vpop.f32.mrf.mxu0
  %v606 = vadd.f32 %v91, %v605
  %v607 = vpop.f32.mrf.mxu0
  %608 = vmatprep.mubr.f32.mxu0 0.0
  %609 = vmatmul.mubr.f32.gmra.mxu0 %v247
  %v610 = vpop.f32.mrf.mxu0
  %v611 = vadd.f32 %v91, %v610
  %v612 = vpop.f32.mrf.mxu0
  %613 = vmatprep.mubr.f32.mxu0 0.0
  %614 = vmatmul.mubr.f32.gmra.mxu0 %v250
  %v615 = vpop.f32.mrf.mxu0
  %v616 = vadd.f32 %v91, %v615
  %v617 = vpop.f32.mrf.mxu0
  %618 = vmatprep.mubr.f32.mxu0 0.0
  %619 = vmatmul.mubr.f32.gmra.mxu0 %v253
  %v620 = vpop.f32.mrf.mxu0
  %v621 = vadd.f32 %v91, %v620
  %v622 = vpop.f32.mrf.mxu0
  %623 = vmatprep.mubr.f32.mxu0 0.0
  %624 = vmatmul.mubr.f32.gmra.mxu0 %v256
  %v625 = vpop.f32.mrf.mxu0
  %v626 = vadd.f32 %v91, %v625
  %v627 = vpop.f32.mrf.mxu0
  %628 = vmatprep.mubr.f32.mxu0 0.0
  %629 = vmatmul.mubr.f32.gmra.mxu0 %v259
  %v630 = vpop.f32.mrf.mxu0
  %v631 = vadd.f32 %v91, %v630
  %v632 = vpop.f32.mrf.mxu0
  %633 = vmatprep.mubr.f32.mxu0 0.0
  %634 = vmatmul.mubr.f32.gmra.mxu0 %v262
  %v635 = vpop.f32.mrf.mxu0
  %v636 = vadd.f32 %v91, %v635
  %v637 = vpop.f32.mrf.mxu0
  %638 = vmatprep.mubr.f32.mxu0 0.0
  %639 = vmatmul.mubr.f32.gmra.mxu0 %v265
  %v640 = vpop.f32.mrf.mxu0
  %v641 = vadd.f32 %v91, %v640
  %v642 = vpop.f32.mrf.mxu0
  %643 = vmatprep.mubr.f32.mxu0 0.0
  %644 = vmatmul.mubr.f32.gmra.mxu0 %v268
  %v645 = vpop.f32.mrf.mxu0
  %v646 = vadd.f32 %v91, %v645
  %v647 = vpop.f32.mrf.mxu0
  %648 = vmatprep.mubr.f32.mxu0 0.0
  %649 = vmatmul.mubr.f32.gmra.mxu0 %v271
  %v650 = vpop.f32.mrf.mxu0
  %v651 = vadd.f32 %v91, %v650
  %v652 = vpop.f32.mrf.mxu0
  %653 = vmatprep.mubr.f32.mxu0 0.0
  %654 = vmatmul.mubr.f32.gmra.mxu0 %v274
  %v655 = vpop.f32.mrf.mxu0
  %v656 = vadd.f32 %v91, %v655
  %v657 = vpop.f32.mrf.mxu0
  %658 = vmatprep.mubr.f32.mxu0 0.0
  %659 = vmatmul.mubr.f32.gmra.mxu0 %v277
  %v660 = vpop.f32.mrf.mxu0
  %v661 = vadd.f32 %v91, %v660
  %v662 = vpop.f32.mrf.mxu0
  %663 = vmatprep.mubr.f32.mxu0 0.0
  %664 = vmatmul.mubr.f32.gmra.mxu0 %v280
  %v665 = vpop.f32.mrf.mxu0
  %v666 = vadd.f32 %v91, %v665
  %v667 = vpop.f32.mrf.mxu0
  %668 = vmatprep.mubr.f32.mxu0 0.0
  %669 = vmatmul.mubr.f32.gmra.mxu0 %v283
  %v670 = vpop.f32.mrf.mxu0
  %v671 = vadd.f32 %v91, %v670
  %v672 = vpop.f32.mrf.mxu0
  %673 = vdwg.mxu0
  %v674 = vmax.f32 %v356, 0.0
  %v675 = vmax.f32 %v361, 0.0
  %v676 = vmax.f32 %v366, 0.0
  %v677 = vmax.f32 %v371, 0.0
  %v678 = vmax.f32 %v376, 0.0
  %v679 = vmax.f32 %v381, 0.0
  %v680 = vmax.f32 %v386, 0.0
  %v681 = vmax.f32 %v391, 0.0
  %v682 = vmax.f32 %v396, 0.0
  %v683 = vmax.f32 %v401, 0.0
  %v684 = vmax.f32 %v406, 0.0
  %v685 = vmax.f32 %v411, 0.0
  %v686 = vmax.f32 %v416, 0.0
  %v687 = vmax.f32 %v421, 0.0
  %v688 = vmax.f32 %v426, 0.0
  %v689 = vmax.f32 %v431, 0.0
  %v690 = vmax.f32 %v436, 0.0
  %v691 = vmax.f32 %v441, 0.0
  %v692 = vmax.f32 %v446, 0.0
  %v693 = vmax.f32 %v451, 0.0
  %v694 = vmax.f32 %v456, 0.0
  %v695 = vmax.f32 %v461, 0.0
  %v696 = vmax.f32 %v466, 0.0
  %v697 = vmax.f32 %v471, 0.0
  %v698 = vmax.f32 %v476, 0.0
  %v699 = vmax.f32 %v481, 0.0
  %v700 = vmax.f32 %v486, 0.0
  %v701 = vmax.f32 %v491, 0.0
  %v702 = vmax.f32 %v496, 0.0
  %v703 = vmax.f32 %v501, 0.0
  %v704 = vmax.f32 %v506, 0.0
  %v705 = vmax.f32 %v511, 0.0
  %v706 = vmax.f32 %v516, 0.0
  %v707 = vmax.f32 %v521, 0.0
  %v708 = vmax.f32 %v526, 0.0
  %v709 = vmax.f32 %v531, 0.0
  %v710 = vmax.f32 %v536, 0.0
  %v711 = vmax.f32 %v541, 0.0
  %v712 = vmax.f32 %v546, 0.0
  %v713 = vmax.f32 %v551, 0.0
  %v714 = vmax.f32 %v556, 0.0
  %v715 = vmax.f32 %v561, 0.0
  %v716 = vmax.f32 %v566, 0.0
  %v717 = vmax.f32 %v571, 0.0
  %v718 = vmax.f32 %v576, 0.0
  %v719 = vmax.f32 %v581, 0.0
  %v720 = vmax.f32 %v586, 0.0
  %v721 = vmax.f32 %v591, 0.0
  %v722 = vmax.f32 %v596, 0.0
  %v723 = vmax.f32 %v601, 0.0
  %v724 = vmax.f32 %v606, 0.0
  %v725 = vmax.f32 %v611, 0.0
  %v726 = vmax.f32 %v616, 0.0
  %v727 = vmax.f32 %v621, 0.0
  %v728 = vmax.f32 %v626, 0.0
  %v729 = vmax.f32 %v631, 0.0
  %v730 = vmax.f32 %v636, 0.0
  %v731 = vmax.f32 %v641, 0.0
  %v732 = vmax.f32 %v646, 0.0
  %v733 = vmax.f32 %v651, 0.0
  %v734 = vmax.f32 %v656, 0.0
  %v735 = vmax.f32 %v661, 0.0
  %v736 = vmax.f32 %v666, 0.0
  %v737 = vmax.f32 %v671, 0.0
  %v738 = vld [vmem:[%s2] sm:$0xff]
  %v740 = vcombine.high %v738, %v738
  %v742 = vunpack.c.l.s4 1983009808
  %v743 = vunpack.c.0.s8 %v742
  %v744 = vlaneseq
  %v745 = vshrl.u32 %v744, 7
  %v746 = vsub.s32 %v743, %v745
  %v747 = vrot.slane %v738, %v746
  %v749 = vunpack.c.l.s4 1983009808
  %v750 = vunpack.c.0.s8 %v749
  %v751 = vlaneseq
  %v752 = vshrl.u32 %v751, 7
  %v753 = vsub.s32 %v750, %v752
  %v754 = vrot.slane %v740, %v753
  %v755 = vcombine.high %v747, %v747
  %v756 = vcombine.high %v754, %v754
  %761 = vmatprep.subr.mxu0 0.0
  %762 = vmatpush1.msra.mxu0 %v689
  %763 = vmatprep.subr.mxu0 0.0
  %764 = vmatpush1.msra.mxu0 %v688
  %765 = vmatprep.subr.mxu0 0.0
  %766 = vmatpush1.msra.mxu0 %v687
  %767 = vmatprep.subr.mxu0 0.0
  %768 = vmatpush1.msra.mxu0 %v686
  %769 = vmatprep.subr.mxu0 0.0
  %770 = vmatpush1.msra.mxu0 %v685
  %771 = vmatprep.subr.mxu0 0.0
  %772 = vmatpush1.msra.mxu0 %v684
  %773 = vmatprep.subr.mxu0 0.0
  %774 = vmatpush1.msra.mxu0 %v683
  %775 = vmatprep.subr.mxu0 0.0
  %776 = vmatpush1.msra.mxu0 %v682
  %777 = vmatprep.subr.mxu0 0.0
  %778 = vmatpush1.msra.mxu0 %v681
  %779 = vmatprep.subr.mxu0 0.0
  %780 = vmatpush1.msra.mxu0 %v680
  %781 = vmatprep.subr.mxu0 0.0
  %782 = vmatpush1.msra.mxu0 %v679
  %783 = vmatprep.subr.mxu0 0.0
  %784 = vmatpush1.msra.mxu0 %v678
  %785 = vmatprep.subr.mxu0 0.0
  %786 = vmatpush1.msra.mxu0 %v677
  %787 = vmatprep.subr.mxu0 0.0
  %788 = vmatpush1.msra.mxu0 %v676
  %789 = vmatprep.subr.mxu0 0.0
  %790 = vmatpush1.msra.mxu0 %v675
  %791 = vmatprep.subr.mxu0 0.0
  %792 = vmatpush1.msra.mxu0 %v674
  %793 = vmatprep.subr.mxu0 0.0
  %794 = vmatpush2.msra.mxu0 %v705
  %795 = vmatprep.subr.mxu0 0.0
  %796 = vmatpush2.msra.mxu0 %v704
  %797 = vmatprep.subr.mxu0 0.0
  %798 = vmatpush2.msra.mxu0 %v703
  %799 = vmatprep.subr.mxu0 0.0
  %800 = vmatpush2.msra.mxu0 %v702
  %801 = vmatprep.subr.mxu0 0.0
  %802 = vmatpush2.msra.mxu0 %v701
  %803 = vmatprep.subr.mxu0 0.0
  %804 = vmatpush2.msra.mxu0 %v700
  %805 = vmatprep.subr.mxu0 0.0
  %806 = vmatpush2.msra.mxu0 %v699
  %807 = vmatprep.subr.mxu0 0.0
  %808 = vmatpush2.msra.mxu0 %v698
  %809 = vmatprep.subr.mxu0 0.0
  %810 = vmatpush2.msra.mxu0 %v697
  %811 = vmatprep.subr.mxu0 0.0
  %812 = vmatpush2.msra.mxu0 %v696
  %813 = vmatprep.subr.mxu0 0.0
  %814 = vmatpush2.msra.mxu0 %v695
  %815 = vmatprep.subr.mxu0 0.0
  %816 = vmatpush2.msra.mxu0 %v694
  %817 = vmatprep.subr.mxu0 0.0
  %818 = vmatpush2.msra.mxu0 %v693
  %819 = vmatprep.subr.mxu0 0.0
  %820 = vmatpush2.msra.mxu0 %v692
  %821 = vmatprep.subr.mxu0 0.0
  %822 = vmatpush2.msra.mxu0 %v691
  %823 = vmatprep.subr.mxu0 0.0
  %824 = vmatpush2.msra.mxu0 %v690
  %825 = vmatprep.mubr.f32.mxu0 %v755
  %826 = vmatmul.mubr.f32.gmra.mxu0 %v747
  %v827 = vpop.f32.mrf.mxu0
  %v828 = vadd.f32 0.0, %v827
  %v829 = vpop.f32.mrf.mxu0
  %830 = vdwg.mxu0
  %831 = vmatprep.subr.mxu0 0.0
  %832 = vmatpush1.msra.mxu0 %v721
  %833 = vmatprep.subr.mxu0 0.0
  %834 = vmatpush1.msra.mxu0 %v720
  %835 = vmatprep.subr.mxu0 0.0
  %836 = vmatpush1.msra.mxu0 %v719
  %837 = vmatprep.subr.mxu0 0.0
  %838 = vmatpush1.msra.mxu0 %v718
  %839 = vmatprep.subr.mxu0 0.0
  %840 = vmatpush1.msra.mxu0 %v717
  %841 = vmatprep.subr.mxu0 0.0
  %842 = vmatpush1.msra.mxu0 %v716
  %843 = vmatprep.subr.mxu0 0.0
  %844 = vmatpush1.msra.mxu0 %v715
  %845 = vmatprep.subr.mxu0 0.0
  %846 = vmatpush1.msra.mxu0 %v714
  %847 = vmatprep.subr.mxu0 0.0
  %848 = vmatpush1.msra.mxu0 %v713
  %849 = vmatprep.subr.mxu0 0.0
  %850 = vmatpush1.msra.mxu0 %v712
  %851 = vmatprep.subr.mxu0 0.0
  %852 = vmatpush1.msra.mxu0 %v711
  %853 = vmatprep.subr.mxu0 0.0
  %854 = vmatpush1.msra.mxu0 %v710
  %855 = vmatprep.subr.mxu0 0.0
  %856 = vmatpush1.msra.mxu0 %v709
  %857 = vmatprep.subr.mxu0 0.0
  %858 = vmatpush1.msra.mxu0 %v708
  %859 = vmatprep.subr.mxu0 0.0
  %860 = vmatpush1.msra.mxu0 %v707
  %861 = vmatprep.subr.mxu0 0.0
  %862 = vmatpush1.msra.mxu0 %v706
  %863 = vmatprep.subr.mxu0 0.0
  %864 = vmatpush2.msra.mxu0 %v737
  %865 = vmatprep.subr.mxu0 0.0
  %866 = vmatpush2.msra.mxu0 %v736
  %867 = vmatprep.subr.mxu0 0.0
  %868 = vmatpush2.msra.mxu0 %v735
  %869 = vmatprep.subr.mxu0 0.0
  %870 = vmatpush2.msra.mxu0 %v734
  %871 = vmatprep.subr.mxu0 0.0
  %872 = vmatpush2.msra.mxu0 %v733
  %873 = vmatprep.subr.mxu0 0.0
  %874 = vmatpush2.msra.mxu0 %v732
  %875 = vmatprep.subr.mxu0 0.0
  %876 = vmatpush2.msra.mxu0 %v731
  %877 = vmatprep.subr.mxu0 0.0
  %878 = vmatpush2.msra.mxu0 %v730
  %879 = vmatprep.subr.mxu0 0.0
  %880 = vmatpush2.msra.mxu0 %v729
  %881 = vmatprep.subr.mxu0 0.0
  %882 = vmatpush2.msra.mxu0 %v728
  %883 = vmatprep.subr.mxu0 0.0
  %884 = vmatpush2.msra.mxu0 %v727
  %885 = vmatprep.subr.mxu0 0.0
  %886 = vmatpush2.msra.mxu0 %v726
  %887 = vmatprep.subr.mxu0 0.0
  %888 = vmatpush2.msra.mxu0 %v725
  %889 = vmatprep.subr.mxu0 0.0
  %890 = vmatpush2.msra.mxu0 %v724
  %891 = vmatprep.subr.mxu0 0.0
  %892 = vmatpush2.msra.mxu0 %v723
  %893 = vmatprep.subr.mxu0 0.0
  %894 = vmatpush2.msra.mxu0 %v722
  %895 = vmatprep.mubr.f32.mxu0 %v756
  %896 = vmatmul.mubr.f32.gmra.mxu0 %v754
  %v897 = vpop.f32.mrf.mxu0
  %v898 = vadd.f32 %v828, %v897
  %v899 = vpop.f32.mrf.mxu0
  %900 = vdwg.mxu0
  %v901 = vlaneseq
  %v902 = vshrl.u32 %v901, 7
  %v903 = vsub.s32 6, %v902
  %v904 = vrot.slane %v17, %v903
  %vm905 = vcmask 48128
  %v907 = vsel %vm905, %v18, 0
  %vm909 = vcmask 1045504
  %v911 = vsel %vm909, %v17, 0
  %913 = vmatprep.subr.mxu0 0.0
  %914 = vmatpush1.msra.mxu0 0.0
  %915 = vmatprep.subr.mxu0 0.0
  %916 = vmatpush1.msra.mxu0 0.0
  %917 = vmatprep.subr.mxu0 0.0
  %918 = vmatpush1.msra.mxu0 0.0
  %919 = vmatprep.subr.mxu0 0.0
  %920 = vmatpush1.msra.mxu0 0.0
  %921 = vmatprep.subr.mxu0 0.0
  %922 = vmatpush1.msra.mxu0 0.0
  %923 = vmatprep.subr.mxu0 0.0
  %924 = vmatpush1.msra.mxu0 0.0
  %925 = vmatprep.subr.mxu0 0.0
  %926 = vmatpush1.msra.mxu0 0.0
  %927 = vmatprep.subr.mxu0 0.0
  %928 = vmatpush1.msra.mxu0 0.0
  %929 = vmatprep.subr.mxu0 0.0
  %930 = vmatpush1.msra.mxu0 0.0
  %931 = vmatprep.subr.mxu0 0.0
  %932 = vmatpush1.msra.mxu0 0.0
  %933 = vmatprep.subr.mxu0 0.0
  %934 = vmatpush1.msra.mxu0 0.0
  %935 = vmatprep.subr.mxu0 0.0
  %936 = vmatpush1.msra.mxu0 0.0
  %937 = vmatprep.subr.mxu0 0.0
  %938 = vmatpush1.msra.mxu0 0.0
  %939 = vmatprep.subr.mxu0 0.0
  %940 = vmatpush1.msra.mxu0 0.0
  %941 = vmatprep.subr.mxu0 0.0
  %942 = vmatpush1.msra.mxu0 0.0
  %943 = vmatprep.subr.mxu0 0.0
  %944 = vmatpush1.msra.mxu0 %v911
  %945 = vmatprep.subr.mxu0 0.0
  %946 = vmatpush2.msra.mxu0 0.0
  %947 = vmatprep.subr.mxu0 0.0
  %948 = vmatpush2.msra.mxu0 0.0
  %949 = vmatprep.subr.mxu0 0.0
  %950 = vmatpush2.msra.mxu0 0.0
  %951 = vmatprep.subr.mxu0 0.0
  %952 = vmatpush2.msra.mxu0 0.0
  %953 = vmatprep.subr.mxu0 0.0
  %954 = vmatpush2.msra.mxu0 0.0
  %955 = vmatprep.subr.mxu0 0.0
  %956 = vmatpush2.msra.mxu0 0.0
  %957 = vmatprep.subr.mxu0 0.0
  %958 = vmatpush2.msra.mxu0 0.0
  %959 = vmatprep.subr.mxu0 0.0
  %960 = vmatpush2.msra.mxu0 0.0
  %961 = vmatprep.subr.mxu0 0.0
  %962 = vmatpush2.msra.mxu0 0.0
  %963 = vmatprep.subr.mxu0 0.0
  %964 = vmatpush2.msra.mxu0 0.0
  %965 = vmatprep.subr.mxu0 0.0
  %966 = vmatpush2.msra.mxu0 0.0
  %967 = vmatprep.subr.mxu0 0.0
  %968 = vmatpush2.msra.mxu0 0.0
  %969 = vmatprep.subr.mxu0 0.0
  %970 = vmatpush2.msra.mxu0 0.0
  %971 = vmatprep.subr.mxu0 0.0
  %972 = vmatpush2.msra.mxu0 0.0
  %973 = vmatprep.subr.mxu0 0.0
  %974 = vmatpush2.msra.mxu0 0.0
  %975 = vmatprep.subr.mxu0 0.0
  %976 = vmatpush2.msra.mxu0 0.0
  %977 = vmatprep.mubr.f32.mxu0 0.0
  %978 = vmatmul.mubr.f32.gmra.mxu0 %v907
  %v979 = vpop.f32.mrf.mxu0
  %v980 = vadd.f32 %v904, %v979
  %v981 = vpop.f32.mrf.mxu0
  %982 = vdwg.mxu0
  %v983 = vmax.f32 %v980, 0.0
  %985 = vrot.lane.b32.xlu0 %v983, 8
  %v986 = vpop.permute.xlu0 %985
  %vm988 = vcmask 64512
  %v989 = vsel %vm988, %v898, %v986
  %v990 = vlaneseq
  %v991 = vshrl.u32 %v990, 7
  %v992 = vsub.s32 0, %v991
  %v993 = vrot.slane %v17, %v992
  %994 = vrot.lane.b32.xlu0 %v17, 113
  %v995 = vpop.permute.xlu0 %994
  %996 = vrot.lane.b32.xlu0 %v18, 113
  %v997 = vpop.permute.xlu0 %996
  %1001 = vrot.lane.b32.xlu0 %v993, 114
  %v1002 = vpop.permute.xlu0 %1001
  %vm1004 = vcmask 130048
  %v1006 = vsel %vm1004, %v989, 0
  %1008 = vmatprep.subr.mxu0 0.0
  %1009 = vmatpush1.msra.mxu0 0.0
  %1010 = vmatprep.subr.mxu0 0.0
  %1011 = vmatpush1.msra.mxu0 0.0
  %1012 = vmatprep.subr.mxu0 0.0
  %1013 = vmatpush1.msra.mxu0 0.0
  %1014 = vmatprep.subr.mxu0 0.0
  %1015 = vmatpush1.msra.mxu0 0.0
  %1016 = vmatprep.subr.mxu0 0.0
  %1017 = vmatpush1.msra.mxu0 0.0
  %1018 = vmatprep.subr.mxu0 0.0
  %1019 = vmatpush1.msra.mxu0 0.0
  %1020 = vmatprep.subr.mxu0 0.0
  %1021 = vmatpush1.msra.mxu0 0.0
  %1022 = vmatprep.subr.mxu0 0.0
  %1023 = vmatpush1.msra.mxu0 0.0
  %1024 = vmatprep.subr.mxu0 0.0
  %1025 = vmatpush1.msra.mxu0 0.0
  %1026 = vmatprep.subr.mxu0 0.0
  %1027 = vmatpush1.msra.mxu0 0.0
  %1028 = vmatprep.subr.mxu0 0.0
  %1029 = vmatpush1.msra.mxu0 0.0
  %1030 = vmatprep.subr.mxu0 0.0
  %1031 = vmatpush1.msra.mxu0 0.0
  %1032 = vmatprep.subr.mxu0 0.0
  %1033 = vmatpush1.msra.mxu0 0.0
  %1034 = vmatprep.subr.mxu0 0.0
  %1035 = vmatpush1.msra.mxu0 0.0
  %1036 = vmatprep.subr.mxu0 0.0
  %1037 = vmatpush1.msra.mxu0 %v997
  %1038 = vmatprep.subr.mxu0 0.0
  %1039 = vmatpush1.msra.mxu0 %v995
  %1040 = vmatprep.subr.mxu0 0.0
  %1041 = vmatpush2.msra.mxu0 0.0
  %1042 = vmatprep.subr.mxu0 0.0
  %1043 = vmatpush2.msra.mxu0 0.0
  %1044 = vmatprep.subr.mxu0 0.0
  %1045 = vmatpush2.msra.mxu0 0.0
  %1046 = vmatprep.subr.mxu0 0.0
  %1047 = vmatpush2.msra.mxu0 0.0
  %1048 = vmatprep.subr.mxu0 0.0
  %1049 = vmatpush2.msra.mxu0 0.0
  %1050 = vmatprep.subr.mxu0 0.0
  %1051 = vmatpush2.msra.mxu0 0.0
  %1052 = vmatprep.subr.mxu0 0.0
  %1053 = vmatpush2.msra.mxu0 0.0
  %1054 = vmatprep.subr.mxu0 0.0
  %1055 = vmatpush2.msra.mxu0 0.0
  %1056 = vmatprep.subr.mxu0 0.0
  %1057 = vmatpush2.msra.mxu0 0.0
  %1058 = vmatprep.subr.mxu0 0.0
  %1059 = vmatpush2.msra.mxu0 0.0
  %1060 = vmatprep.subr.mxu0 0.0
  %1061 = vmatpush2.msra.mxu0 0.0
  %1062 = vmatprep.subr.mxu0 0.0
  %1063 = vmatpush2.msra.mxu0 0.0
  %1064 = vmatprep.subr.mxu0 0.0
  %1065 = vmatpush2.msra.mxu0 0.0
  %1066 = vmatprep.subr.mxu0 0.0
  %1067 = vmatpush2.msra.mxu0 0.0
  %1068 = vmatprep.subr.mxu0 0.0
  %1069 = vmatpush2.msra.mxu0 0.0
  %1070 = vmatprep.subr.mxu0 0.0
  %1071 = vmatpush2.msra.mxu0 0.0
  %1072 = vmatprep.mubr.f32.mxu0 0.0
  %1073 = vmatmul.mubr.f32.gmra.mxu0 %v1006
  %v1074 = vpop.f32.mrf.mxu0
  %v1075 = vadd.f32 %v1002, %v1074
  %v1076 = vpop.f32.mrf.mxu0
  %1077 = vdwg.mxu0
  %v1078 = vsub.f32 0.0, %v1075
  %v1079 = vmul.f32 %v1078, 1.442695
  %v1080 = vpow.pop %v1079
  %v1081 = vadd.f32 %v1080, 1.0
  %v1082 = vrcp.pop %v1081
  %v1083 = vmul.f32 1.0, %v1082
  %vm1084 = vcmask 1024
  %1085 = vst.msk [vmem:[%s4] sm:$0x3] %vm1084, %v1083
  // Predicated region
  $region18: #{full_model_forward.1} parent=0 // pred_check
    _
  $region19: #{full_model_forward.1} parent=0 // pred_check_branch
    %1087 = sbr.rel (0) target = $region21
  $region20: #{full_model_forward.1} parent=0 // pred_region
    _
  $region21: #{full_model_forward.1} parent=0 // pred_fallthru
    _
  // Predicated region
  $region22: #{full_model_forward.1} parent=0 // pred_check
    _
  $region23: #{full_model_forward.1} parent=0 // pred_check_branch
    %1089 = sbr.rel (0) target = $region25
  $region24: #{full_model_forward.1} parent=0 // pred_region
    _
  $region25: #{full_model_forward.1} parent=0 // pred_fallthru
    _

</llo_original>
